<compile_context>
chip_gen: v7x
topology: tpu7x:2x2x1
jax: 0.10.0
libtpu: 0.0.40
codegen_flags: <defaults>
</compile_context>

<pallas_src>
import numpy as np
import jax
import jax.numpy as jnp
from jax import lax
from jax.experimental import pallas as pl
from jax.experimental.pallas import tpu as pltpu


def _make_ctc_argmax_kernel(c_total: int, cc: int, need_c_mask: bool):
    """Kernel factory: running argmax over the vocab (sublane) axis."""

    def kernel(x_ref, pred_ref, max_sc, idx_sc):
        c_blk = pl.program_id(2)
        tn, tc, tt = x_ref.shape

        @pl.when(c_blk == 0)
        def _init():
            max_sc[...] = jnp.full_like(max_sc, -jnp.inf)
            idx_sc[...] = jnp.zeros_like(idx_sc)

        c_base = c_blk * tc  # global vocab-row offset of this C block
        # Loop-invariant intra-chunk iota, hoisted out of the reduction loop.
        chunk_iota = lax.broadcasted_iota(jnp.int32, (tn, cc, tt), 1)

        def reduce_chunk(c0, size, run_max, run_idx):
            # c0: chunk start within the block (static or traced); size: static.
            chunk = x_ref[:, pl.ds(c0, size), :].astype(jnp.float32)  # (tn,size,tt)
            iota = chunk_iota if size == cc else chunk_iota[:, :size, :]
            if need_c_mask:
                # Last C block may extend past the real vocab: mask garbage rows.
                row_global = iota + (c_base + c0)
                chunk = jnp.where(row_global < c_total, chunk, -jnp.inf)
            cmax = jnp.max(chunk, axis=1)                             # (tn, tt)
            # First index within the chunk achieving the max (torch tie-break).
            cand = jnp.where(chunk == cmax[:, None, :], iota, jnp.int32(size))
            cidx = jnp.min(cand, axis=1) + (c_base + c0)              # global idx
            better = cmax > run_max       # strict > keeps earlier (lower) index
            return (jnp.where(better, cmax, run_max),
                    jnp.where(better, cidx, run_idx))

        run_max = max_sc[...]
        run_idx = idx_sc[...]

        n_full = tc // cc
        rem = tc % cc
        if n_full > 0:
            if n_full <= 8:  # small vocab block: unroll at trace time
                for i in range(n_full):
                    run_max, run_idx = reduce_chunk(i * cc, cc, run_max, run_idx)
            else:
                def body(i, carry):
                    c0 = pl.multiple_of(i * cc, cc)
                    return reduce_chunk(c0, cc, *carry)
                run_max, run_idx = lax.fori_loop(0, n_full, body, (run_max, run_idx))
        if rem > 0:
            run_max, run_idx = reduce_chunk(n_full * cc, rem, run_max, run_idx)

        max_sc[...] = run_max
        idx_sc[...] = run_idx

        @pl.when(c_blk == pl.num_programs(2) - 1)
        def _finalize():
            pred_ref[...] = idx_sc[...]

    return kernel


def _vmem_params():
    """(per-input-buffer byte budget, scoped vmem_limit_bytes), per chip."""
    cap = 64 * 1024 * 1024  # conservative default = v7x per-TC VMEM
    try:
        cap = int(pltpu.get_tpu_info().vmem_capacity_bytes)
    except Exception:
        pass
    if cap >= 128 * 1024 * 1024:          # v5e / v6e (128 MiB physical)
        return 8 * 1024 * 1024, 64 * 1024 * 1024
    return 8 * 1024 * 1024, 48 * 1024 * 1024  # v7x (64 MiB per TensorCore)


def _choose_tiles(n, c, t_k, itemsize, budget):
    """Pick (TN, TC, TT) satisfying the (8,128) rule and the byte budget."""
    tn = n if n < 8 else 8                       # output sublane dim: full N or 8
    tt_cap = min((t_k // 128) * 128, 8192)       # lane dim: multiple of 128, <= T
    tt_min = min(512, tt_cap)                    # keep DMA segments >= 2 KiB
    if tn * c * tt_min * itemsize <= budget:
        # Whole vocab fits in one block: grow TT as far as the budget allows.
        tt_budget = (budget // (tn * c * itemsize)) // 128 * 128
        tt = max(tt_min, min(tt_cap, tt_budget))
        tc = c
    else:
        # Vocab does not fit: stream it as an "arbitrary" grid axis instead of
        # shrinking the lane dim below 512.
        tt = tt_min
        tc = min(c, max(8, (budget // (tn * tt * itemsize)) // 8 * 8))
    return tn, tc, tt


def greedy_ctc_pred_indices(logits_nct: jax.Array, *, max_block_bytes=None) -> jax.Array:
    """Pallas argmax over the vocab axis of (N, C, T) logits -> (N, T) int32."""
    if logits_nct.ndim != 3:
        raise ValueError("Expected a 3D tensor.")
    n, c, t = logits_nct.shape
    itemsize = jnp.dtype(logits_nct.dtype).itemsize

    budget, vmem_limit = _vmem_params()
    if max_block_bytes is not None:
        budget = int(max_block_bytes)

    # Lane-dense layout: pad tiny T up to one full 128-lane row (padded columns
    # are sliced off below).  Larger, non-128-multiple T uses partial blocks.
    x = logits_nct
    t_k = t
    if t < 128:
        t_k = 128
        x = jnp.pad(x, ((0, 0), (0, 0), (0, t_k - t)))

    tn, tc, tt = _choose_tiles(n, c, t_k, itemsize, budget)

    # Megacore guard (v7x has 2 TensorCores): if the spatial grid collapses to a
    # single block, split the time axis so the second core is not idle.
    grid_n = pl.cdiv(n, tn)
    grid_t = pl.cdiv(t_k, tt)
    if grid_n * grid_t == 1 and tt >= 256:
        tt = ((tt // 2) + 127) // 128 * 128
        grid_t = pl.cdiv(t_k, tt)
    grid_c = pl.cdiv(c, tc)

    cc = min(tc, 8 * max(1, 4 // itemsize))      # sublane-tile-aligned C chunks
    kernel = _make_ctc_argmax_kernel(c, cc, need_c_mask=(c % tc != 0))

    pred = pl.pallas_call(
        kernel,
        out_shape=jax.ShapeDtypeStruct((n, t_k), jnp.int32),
        grid_spec=pltpu.PrefetchScalarGridSpec(
            num_scalar_prefetch=0,
            grid=(grid_n, grid_t, grid_c),
            in_specs=[pl.BlockSpec((tn, tc, tt), lambda i, j, k: (i, k, j))],
            out_specs=pl.BlockSpec((tn, tt), lambda i, j, k: (i, j)),
            scratch_shapes=[
                pltpu.VMEM((tn, tt), jnp.float32),   # running max
                pltpu.VMEM((tn, tt), jnp.int32),     # running argmax
            ],
        ),
        compiler_params=pltpu.CompilerParams(
            dimension_semantics=("parallel", "parallel", "arbitrary"),
            vmem_limit_bytes=vmem_limit,
        ),
        cost_estimate=pl.CostEstimate(
            flops=3 * n * c * t_k,
            transcendentals=0,
            bytes_accessed=n * c * t_k * itemsize + n * t_k * 4,
        ),
    )(x)

    return pred if t_k == t else pred[:, :t]


class GreedyCTCDecoder:
    """Greedy CTC decoder; mirrors the PyTorch module's forward semantics."""

    def __init__(self, blank: int = 0):
        self.blank = blank

    def __call__(self, logits: jax.Array):
        if logits.ndim != 3:
            raise ValueError("Expected a 3D tensor.")
        pred = greedy_ctc_pred_indices(logits)               # (N, T) int32 on TPU
        pred_np = np.asarray(jax.device_get(pred))

        # Host-side blank/repeat collapse, vectorized; identical semantics to the
        # reference's per-token loop (keep iff token != blank and != previous).
        nb = pred_np.shape[0]
        prev = np.concatenate(
            [np.full((nb, 1), -1, dtype=pred_np.dtype), pred_np[:, :-1]], axis=1
        )
        keep = (pred_np != self.blank) & (pred_np != prev)
        # TODO(synk): ragged per-batch Python-list outputs have no Pallas equivalent;
        # the blank/repeat collapse stays host-side, matching the reference module.
        return [pred_np[i, keep[i]].tolist() for i in range(nb)]


if __name__ == "__main__":
    key = jax.random.PRNGKey(0)
    k1, k2, k3 = jax.random.split(key, 3)

    def _ref_argmax(x):
        # Reference includes log_softmax as in the original module (argmax-invariant).
        return jnp.argmax(jax.nn.log_softmax(x, axis=1), axis=1).astype(jnp.int32)

    # 1) Module-sized demo (N, C, T) = (2, 16, 32): padded-T path + unrolled C loop.
    N, C, T = 2, 16, 32
    logits = jax.random.normal(k1, (N, C, T), dtype=jnp.float32)
    pred = greedy_ctc_pred_indices(logits)
    jax.block_until_ready(pred)
    np.testing.assert_array_equal(np.asarray(pred), np.asarray(_ref_argmax(logits)))

    # Full decode (kernel + host collapse) against a naive reference loop.
    decoder = GreedyCTCDecoder(blank=0)
    decoded = decoder(logits)
    ref_np = np.asarray(_ref_argmax(logits))
    for i in range(N):
        seq, prev_tok = [], None
        for tok in ref_np[i]:
            tok = int(tok)
            if tok != 0 and tok != prev_tok:
                seq.append(tok)
            prev_tok = tok
        assert seq == list(decoded[i]), (seq, decoded[i])

    # 2) fori_loop C path + C tail + partial T block (C=203 full-in-block).
    logits2 = jax.random.normal(k2, (3, 203, 160), dtype=jnp.float32)
    pred2 = greedy_ctc_pred_indices(logits2)
    jax.block_until_ready(pred2)
    np.testing.assert_array_equal(np.asarray(pred2), np.asarray(_ref_argmax(logits2)))

    # 3) Force the vocab-as-grid-axis (huge-C) path with a tiny block budget,
    #    including the masked C tail (80 % 32 != 0).
    logits3 = jax.random.normal(k3, (4, 80, 200), dtype=jnp.float32)
    pred3 = greedy_ctc_pred_indices(logits3, max_block_bytes=64 * 1024)
    jax.block_until_ready(pred3)
    np.testing.assert_array_equal(np.asarray(pred3), np.asarray(_ref_argmax(logits3)))

    print("KERNEL_OK")
</pallas_src>

<mosaic_0001>
module attributes {stable_mosaic.version = 11 : i64} {
  func.func @kernel(%arg0: i32, %arg1: i32, %arg2: i32, %arg3: memref<2x16x128xf32, #tpu.memory_space<vmem>>, %arg4: memref<2x128xi32, #tpu.memory_space<vmem>>, %arg5: memref<2x128xf32, #tpu.memory_space<vmem>>, %arg6: memref<2x128xi32, #tpu.memory_space<vmem>>) attributes {dimension_semantics = [#tpu.dimension_semantics<parallel>, #tpu.dimension_semantics<parallel>, #tpu.dimension_semantics<arbitrary>], iteration_bounds = array<i64: 1, 1, 1>, scalar_prefetch = 0 : i64, scratch_operands = 2 : i64, tpu.core_type = #tpu.core_type<tc>, window_params = [{transform_indices = @transform_0, window_bounds = array<i64: 2, 16, 128>}, {transform_indices = @transform_1, window_bounds = array<i64: 2, 128>}]} {
    %c0_i32 = arith.constant 0 : i32
    %0 = arith.cmpi eq, %arg2, %c0_i32 : i32
    %1 = arith.extui %0 : i1 to i32
    %c0_i32_0 = arith.constant 0 : i32
    %2 = arith.cmpi ne, %1, %c0_i32_0 : i32
    scf.if %2 {
      %cst_21 = arith.constant 0xFF800000 : f32
      %40 = vector.broadcast %cst_21 : f32 to vector<2x128xf32>
      %c0_22 = arith.constant 0 : index
      %c0_23 = arith.constant 0 : index
      %41 = vector.load %arg5[%c0_22, %c0_23] : memref<2x128xf32, #tpu.memory_space<vmem>>, vector<2x128xf32>
      tpu.vector_store %arg5[%c0_22, %c0_23], %40 {strides = array<i32>} : memref<2x128xf32, #tpu.memory_space<vmem>>, vector<2x128xf32>,
      %c0_i32_24 = arith.constant 0 : i32
      %42 = vector.broadcast %c0_i32_24 : i32 to vector<2x128xi32>
      %c0_25 = arith.constant 0 : index
      %c0_26 = arith.constant 0 : index
      %43 = vector.load %arg6[%c0_25, %c0_26] : memref<2x128xi32, #tpu.memory_space<vmem>>, vector<2x128xi32>
      tpu.vector_store %arg6[%c0_25, %c0_26], %42 {strides = array<i32>} : memref<2x128xi32, #tpu.memory_space<vmem>>, vector<2x128xi32>,
    } else {
    }
    %c16_i32 = arith.constant 16 : i32
    %3 = arith.muli %arg2, %c16_i32 : i32
    %4 = tpu.iota {dimensions = array<i32: 1>} : vector<2x8x128xi32>
    %c0 = arith.constant 0 : index
    %c0_1 = arith.constant 0 : index
    %5 = vector.load %arg5[%c0, %c0_1] : memref<2x128xf32, #tpu.memory_space<vmem>>, vector<2x128xf32>
    %c0_2 = arith.constant 0 : index
    %c0_3 = arith.constant 0 : index
    %6 = vector.load %arg6[%c0_2, %c0_3] : memref<2x128xi32, #tpu.memory_space<vmem>>, vector<2x128xi32>
    %c0_4 = arith.constant 0 : index
    %c0_5 = arith.constant 0 : index
    %c0_6 = arith.constant 0 : index
    %7 = vector.load %arg3[%c0_4, %c0_5, %c0_6] : memref<2x16x128xf32, #tpu.memory_space<vmem>>, vector<2x8x128xf32>
    %cst = arith.constant dense<0xFF800000> : vector<2x128xf32>
    %8 = vector.multi_reduction <maximumf>, %7, %cst [1] : vector<2x8x128xf32> to vector<2x128xf32>
    %9 = vector.shape_cast %8 : vector<2x128xf32> to vector<2x1x128xf32>
    %10 = vector.broadcast %9 : vector<2x1x128xf32> to vector<2x8x128xf32>
    %11 = arith.cmpf oeq, %7, %10 : vector<2x8x128xf32>
    %c8_i32 = arith.constant 8 : i32
    %12 = vector.broadcast %c8_i32 : i32 to vector<2x8x128xi32>
    %13 = arith.select %11, %4, %12 : vector<2x8x128xi1>, vector<2x8x128xi32>
    %cst_7 = arith.constant dense<2147483647> : vector<2x128xi32>
    %14 = vector.multi_reduction <minsi>, %13, %cst_7 [1] : vector<2x8x128xi32> to vector<2x128xi32>
    %c0_i32_8 = arith.constant 0 : i32
    %15 = arith.addi %3, %c0_i32_8 : i32
    %16 = vector.broadcast %15 : i32 to vector<2x128xi32>
    %17 = arith.addi %14, %16 : vector<2x128xi32>
    %18 = arith.cmpf ogt, %8, %5 : vector<2x128xf32>
    %19 = arith.select %18, %8, %5 : vector<2x128xi1>, vector<2x128xf32>
    %20 = arith.select %18, %17, %6 : vector<2x128xi1>, vector<2x128xi32>
    %c0_9 = arith.constant 0 : index
    %c8 = arith.constant 8 : index
    %c0_10 = arith.constant 0 : index
    %21 = vector.load %arg3[%c0_9, %c8, %c0_10] : memref<2x16x128xf32, #tpu.memory_space<vmem>>, vector<2x8x128xf32>
    %cst_11 = arith.constant dense<0xFF800000> : vector<2x128xf32>
    %22 = vector.multi_reduction <maximumf>, %21, %cst_11 [1] : vector<2x8x128xf32> to vector<2x128xf32>
    %23 = vector.shape_cast %22 : vector<2x128xf32> to vector<2x1x128xf32>
    %24 = vector.broadcast %23 : vector<2x1x128xf32> to vector<2x8x128xf32>
    %25 = arith.cmpf oeq, %21, %24 : vector<2x8x128xf32>
    %c8_i32_12 = arith.constant 8 : i32
    %26 = vector.broadcast %c8_i32_12 : i32 to vector<2x8x128xi32>
    %27 = arith.select %25, %4, %26 : vector<2x8x128xi1>, vector<2x8x128xi32>
    %cst_13 = arith.constant dense<2147483647> : vector<2x128xi32>
    %28 = vector.multi_reduction <minsi>, %27, %cst_13 [1] : vector<2x8x128xi32> to vector<2x128xi32>
    %c8_i32_14 = arith.constant 8 : i32
    %29 = arith.addi %3, %c8_i32_14 : i32
    %30 = vector.broadcast %29 : i32 to vector<2x128xi32>
    %31 = arith.addi %28, %30 : vector<2x128xi32>
    %32 = arith.cmpf ogt, %22, %19 : vector<2x128xf32>
    %33 = arith.select %32, %22, %19 : vector<2x128xi1>, vector<2x128xf32>
    %34 = arith.select %32, %31, %20 : vector<2x128xi1>, vector<2x128xi32>
    %c0_15 = arith.constant 0 : index
    %c0_16 = arith.constant 0 : index
    %35 = vector.load %arg5[%c0_15, %c0_16] : memref<2x128xf32, #tpu.memory_space<vmem>>, vector<2x128xf32>
    tpu.vector_store %arg5[%c0_15, %c0_16], %33 {strides = array<i32>} : memref<2x128xf32, #tpu.memory_space<vmem>>, vector<2x128xf32>,
    %c0_17 = arith.constant 0 : index
    %c0_18 = arith.constant 0 : index
    %36 = vector.load %arg6[%c0_17, %c0_18] : memref<2x128xi32, #tpu.memory_space<vmem>>, vector<2x128xi32>
    tpu.vector_store %arg6[%c0_17, %c0_18], %34 {strides = array<i32>} : memref<2x128xi32, #tpu.memory_space<vmem>>, vector<2x128xi32>,
    %c0_i32_19 = arith.constant 0 : i32
    %37 = arith.cmpi eq, %arg2, %c0_i32_19 : i32
    %38 = arith.extui %37 : i1 to i32
    %c0_i32_20 = arith.constant 0 : i32
    %39 = arith.cmpi ne, %38, %c0_i32_20 : i32
    scf.if %39 {
      %c0_21 = arith.constant 0 : index
      %c0_22 = arith.constant 0 : index
      %40 = vector.load %arg6[%c0_21, %c0_22] : memref<2x128xi32, #tpu.memory_space<vmem>>, vector<2x128xi32>
      %c0_23 = arith.constant 0 : index
      %c0_24 = arith.constant 0 : index
      %41 = vector.load %arg4[%c0_23, %c0_24] : memref<2x128xi32, #tpu.memory_space<vmem>>, vector<2x128xi32>
      tpu.vector_store %arg4[%c0_23, %c0_24], %40 {strides = array<i32>} : memref<2x128xi32, #tpu.memory_space<vmem>>, vector<2x128xi32>,
    } else {
    }
    return
  }
  func.func @transform_0(%arg0: i32, %arg1: i32, %arg2: i32) -> (i32, i32, i32) {
    %c0_i32 = arith.constant 0 : i32
    return %arg0, %arg2, %arg1 : i32, i32, i32
  }
  func.func @transform_1(%arg0: i32, %arg1: i32, %arg2: i32) -> (i32, i32) {
    %c0_i32 = arith.constant 0 : i32
    return %arg0, %arg1 : i32, i32
  }
}

</mosaic_0001>

<llo_original>
// kernel: tpu_custom_call.1
$region0: #{tpu_custom_call.1}
  #allocation0 [shape = 'u32[]', space=smem, size = 0x4, offset = 0x4, fixed_abs, tag = 'smem constant byte address 0x4 - core index']
  #allocation1 [shape = 'u32[144,128]{1,0:T(1,128)}', space=vmem, size = 0x12000, scoped, tag = 'internal scratch']
  #allocation2 [shape = 'f32[2,128]{1,0:T(2,128)}', space=vmem, size = 0x400, scoped, tag = 'scratch operand']
  #allocation3 [shape = 's32[2,128]{1,0:T(2,128)}', space=vmem, size = 0x400, scoped, tag = 'scratch operand']
  %s0 = inlined_call_operand.hbm [shape: f32[2,16,128], index: 0, kind: input, shape index: {}]
  %s1 = inlined_call_operand.hbm [shape: s32[2,128], index: 1, kind: output, shape index: {}]
  %s2 = sld [smem:[#allocation0]]
  $region26: #{tpu_custom_call.1} parent=0
    _
  %s4 = ssub.s32 1, %s2
  %s5 = scalar_select 0, %s4, %s2
  $region1: #{tpu_custom_call.1} parent=0
    #allocation4 [shape = 'u8[16384]{0}', space=vmem, size = 0x4000, scoped, tag = 'input window, operand 0, single buffered']
    #allocation5 [shape = 's32[1]{0}', space=sflag, size = 0x4, scoped, tag = 'scoped memory for tpu_custom_call.1']
    #allocation6 [shape = 's32[1]{0}', space=sflag, size = 0x4, scoped, tag = 'scoped memory for tpu_custom_call.1']
    #allocation7 [shape = 'u8[1024]{0}', space=vmem, size = 0x400, scoped, tag = 'output window, operand 0, single buffered']
    %6 = vsyncpa [#allocation5], 0
    %7 = vsyncpa [#allocation6], 0
    // Predicated region
    $region2: #{tpu_custom_call.1} parent=1 // pred_check
      _
    $region3: #{tpu_custom_call.1} parent=1 // pred_check_branch
      %9 = sbr.rel (0) target = $region5
    $region4: #{tpu_custom_call.1} parent=1 // pred_region
      %s11 = ssub.s32 512, 512
      %12 = vsyncadd [#allocation5], %s11
      %s13 = sshll.u32 [#allocation4], 4
      %s14 = int_to_ptr.vmem [resolvable:$true] %s13
      %19 = dma.hbm_to_vmem [thread:$0]  %s0, 512, %s14, [#allocation5], 128, 128, 8
    $region5: #{tpu_custom_call.1} parent=1 // pred_fallthru
      _
    // Predicated region
    $region6: #{tpu_custom_call.1} parent=1 // pred_check
      _
    $region7: #{tpu_custom_call.1} parent=1 // pred_check_branch
      %21 = sbr.rel (0) target = $region9
    $region8: #{tpu_custom_call.1} parent=1 // pred_region
      %22 = dma.done [#allocation5], 512
    $region9: #{tpu_custom_call.1} parent=1 // pred_fallthru
      _
    %p23 = scmp.eq.s32.totalorder 0, 0
    // Predicated region
    $region10: #{tpu_custom_call.1} parent=1 // pred_check
      %p24 = pneg %p23
    $region11: #{tpu_custom_call.1} parent=1 // pred_check_branch
      %26 = sbr.rel (%p24) target = $region13
    $region12: #{tpu_custom_call.1} parent=1 // pred_region
      %27 = vst [vmem:[#allocation2] sm:$0x3] -inf
      %28 = vst [vmem:[#allocation3] sm:$0x3] 0
    $region13: #{tpu_custom_call.1} parent=1 // pred_fallthru
      _
    %s29 = smul.u32 0, 16
    %v30 = vlaneseq
    %v31 = vshrl.u32 %v30, 7
    %v32 = vld [vmem:[#allocation2] sm:$0x3]
    %v33 = vld [vmem:[#allocation3] sm:$0x3]
    %v34 = vld [vmem:[#allocation4] sm:$0xff]
    %v35 = vld [vmem:[#allocation4 + $0x10] sm:$0xff]
    %v36 = vrot.slane %v34, 4
    %v37 = vmax.f32 %v34, %v36
    %v38 = vrot.slane %v37, 2
    %v39 = vmax.f32 %v37, %v38
    %v40 = vrot.slane %v39, 1
    %v41 = vmax.f32 %v39, %v40
    %v42 = vrot.slane %v35, 4
    %v43 = vmax.f32 %v35, %v42
    %v44 = vrot.slane %v43, 2
    %v45 = vmax.f32 %v43, %v44
    %v46 = vrot.slane %v45, 1
    %v47 = vmax.f32 %v45, %v46
    %vm48 = vcmp.eq.f32.partialorder %v34, %v41
    %vm49 = vcmp.eq.f32.partialorder %v35, %v47
    %v50 = vsel %vm48, %v31, 8
    %v51 = vsel %vm49, %v31, 8
    %v52 = vrot.slane %v50, 4
    %vm53 = vcmp.lt.s32.totalorder %v50, %v52
    %v54 = vsel %vm53, %v50, %v52
    %v55 = vrot.slane %v54, 2
    %vm56 = vcmp.lt.s32.totalorder %v54, %v55
    %v57 = vsel %vm56, %v54, %v55
    %v58 = vrot.slane %v57, 1
    %vm59 = vcmp.lt.s32.totalorder %v57, %v58
    %v60 = vsel %vm59, %v57, %v58
    %v61 = vrot.slane %v51, 4
    %vm62 = vcmp.lt.s32.totalorder %v51, %v61
    %v63 = vsel %vm62, %v51, %v61
    %v64 = vrot.slane %v63, 2
    %vm65 = vcmp.lt.s32.totalorder %v63, %v64
    %v66 = vsel %vm65, %v63, %v64
    %v67 = vrot.slane %v66, 1
    %vm68 = vcmp.lt.s32.totalorder %v66, %v67
    %v69 = vsel %vm68, %v66, %v67
    %v70 = vstv %s29
    %v71 = vadd.s32 %v60, %v70
    %v72 = vadd.s32 %v69, %v70
    %v74 = vrot.slane %v32, 1
    %vm77 = vcmp.gt.f32.partialorder %v41, %v32
    %vm78 = vcmp.gt.f32.partialorder %v47, %v74
    %v79 = vsel %vm77, %v41, %v32
    %v80 = vsel %vm78, %v47, %v74
    %v81 = vrot.slane %v33, 1
    %v82 = vsel %vm77, %v71, %v33
    %v83 = vsel %vm78, %v72, %v81
    %v84 = vld [vmem:[#allocation4 + $0x8] sm:$0xff]
    %v85 = vld [vmem:[#allocation4 + $0x18] sm:$0xff]
    %v86 = vrot.slane %v84, 4
    %v87 = vmax.f32 %v84, %v86
    %v88 = vrot.slane %v87, 2
    %v89 = vmax.f32 %v87, %v88
    %v90 = vrot.slane %v89, 1
    %v91 = vmax.f32 %v89, %v90
    %v92 = vrot.slane %v85, 4
    %v93 = vmax.f32 %v85, %v92
    %v94 = vrot.slane %v93, 2
    %v95 = vmax.f32 %v93, %v94
    %v96 = vrot.slane %v95, 1
    %v97 = vmax.f32 %v95, %v96
    %vm98 = vcmp.eq.f32.partialorder %v84, %v91
    %vm99 = vcmp.eq.f32.partialorder %v85, %v97
    %v100 = vsel %vm98, %v31, 8
    %v101 = vsel %vm99, %v31, 8
    %v102 = vrot.slane %v100, 4
    %vm103 = vcmp.lt.s32.totalorder %v100, %v102
    %v104 = vsel %vm103, %v100, %v102
    %v105 = vrot.slane %v104, 2
    %vm106 = vcmp.lt.s32.totalorder %v104, %v105
    %v107 = vsel %vm106, %v104, %v105
    %v108 = vrot.slane %v107, 1
    %vm109 = vcmp.lt.s32.totalorder %v107, %v108
    %v110 = vsel %vm109, %v107, %v108
    %v111 = vrot.slane %v101, 4
    %vm112 = vcmp.lt.s32.totalorder %v101, %v111
    %v113 = vsel %vm112, %v101, %v111
    %v114 = vrot.slane %v113, 2
    %vm115 = vcmp.lt.s32.totalorder %v113, %v114
    %v116 = vsel %vm115, %v113, %v114
    %v117 = vrot.slane %v116, 1
    %vm118 = vcmp.lt.s32.totalorder %v116, %v117
    %v119 = vsel %vm118, %v116, %v117
    %s120 = sadd.s32 %s29, 8
    %v121 = vstv %s120
    %v122 = vadd.s32 %v110, %v121
    %v123 = vadd.s32 %v119, %v121
    %vm124 = vcmp.gt.f32.partialorder %v91, %v79
    %vm125 = vcmp.gt.f32.partialorder %v97, %v80
    %v126 = vsel %vm124, %v91, %v79
    %v127 = vsel %vm125, %v97, %v80
    %v128 = vsel %vm124, %v122, %v82
    %v129 = vsel %vm125, %v123, %v83
    %v132 = vrot.slane %v127, 7
    %vm133 = vcmask 1041409
    %v134 = vsel %vm133, %v132, %v126
    %136 = vst [vmem:[#allocation2] sm:$0x3] %v134
    %v137 = vrot.slane %v129, 7
    %v138 = vsel %vm133, %v137, %v128
    %139 = vst [vmem:[#allocation3] sm:$0x3] %v138
    // Predicated region
    $region14: #{tpu_custom_call.1} parent=1 // pred_check
      %p140 = pneg %p23
    $region15: #{tpu_custom_call.1} parent=1 // pred_check_branch
      %142 = sbr.rel (%p140) target = $region17
    $region16: #{tpu_custom_call.1} parent=1 // pred_region
      %v143 = vld [vmem:[#allocation3] sm:$0x3]
      %144 = vst [vmem:[#allocation7] sm:$0x3] %v143
    $region17: #{tpu_custom_call.1} parent=1 // pred_fallthru
      _
    // Predicated region
    $region18: #{tpu_custom_call.1} parent=1 // pred_check
      _
    $region19: #{tpu_custom_call.1} parent=1 // pred_check_branch
      %146 = sbr.rel (0) target = $region21
    $region20: #{tpu_custom_call.1} parent=1 // pred_region
      %s148 = ssub.s32 32, 32
      %149 = vsyncadd [#allocation6], %s148
      %s151 = sshll.u32 [#allocation7], 4
      %s152 = int_to_ptr.vmem [resolvable:$true] %s151
      %154 = dma.vmem_to_hbm [thread:$0]  %s152, 32, %s1, [#allocation6]
    $region21: #{tpu_custom_call.1} parent=1 // pred_fallthru
      _
    // Predicated region
    $region22: #{tpu_custom_call.1} parent=1 // pred_check
      _
    $region23: #{tpu_custom_call.1} parent=1 // pred_check_branch
      %156 = sbr.rel (0) target = $region25
    $region24: #{tpu_custom_call.1} parent=1 // pred_region
      %157 = dma.done [#allocation6], 32
    $region25: #{tpu_custom_call.1} parent=1 // pred_fallthru
      _
    %158 = vsyncpa [#allocation5], 1
    %159 = vsyncpa [#allocation6], 1

</llo_original>
